<compile_context>
chip_gen: v6e
topology: v6e:2x2x1
jax: 0.10.0
libtpu: 0.0.40
codegen_flags: <defaults>
</compile_context>

<pallas_src>
from types import SimpleNamespace

import jax
import jax.numpy as jnp
from jax.experimental import pallas as pl
from jax.experimental.pallas import tpu as pltpu


def _rup(n, m):
    return ((n + m - 1) // m) * m


# ----------------------------------------------------------------------------
# Raw (PyTorch-equivalent) parameter construction
# ----------------------------------------------------------------------------
def init_raw_params(hparams, key):
    latent = (hparams.layers_size[0] // 2
              if hparams.state_based_value else hparams.layers_size[0])
    keys = iter(jax.random.split(key, 64))

    def linear(i, o):  # stored pre-transposed as (in, out): y = x @ W
        return 0.1 * jax.random.normal(next(keys), (i, o), jnp.float32)

    def bn(f):  # (gamma, beta, running_mean, running_var)
        g = 1.0 + 0.1 * jax.random.normal(next(keys), (f,), jnp.float32)
        b = 0.1 * jax.random.normal(next(keys), (f,), jnp.float32)
        rm = 0.1 * jax.random.normal(next(keys), (f,), jnp.float32)
        rv = 1.0 + 0.1 * jnp.abs(jax.random.normal(next(keys), (f,), jnp.float32))
        return (g, b, rm, rv)

    ls = hparams.layers_size
    raw = {
        "wp1": linear(hparams.context_dim, latent), "bnp1": bn(latent),
        "wp2": linear(latent, latent), "bnp2": bn(latent),
        "ws1": linear(hparams.obs_dim, latent), "bns1": bn(latent),
        "ws2": linear(latent, latent), "bns2": bn(latent),
    }
    for i in range(len(ls) - 1):
        raw[f"wf{i + 1}"] = linear(ls[i], ls[i + 1])
        raw[f"bnf{i + 1}"] = bn(ls[i + 1])
    raw["wmu"] = linear(ls[-1], ls[-1])
    raw["bmu"] = 0.1 * jax.random.normal(next(keys), (ls[-1],), jnp.float32)
    raw["wv"] = linear(ls[-1], 1)
    # TODO(synk): fc_var weights and the Dirichlet prior buffers are not used by
    # forward(); forward_sample / sample / KL path are not translated.
    return raw


# ----------------------------------------------------------------------------
# BN folding + slab packing (done once in plain JAX, outside the kernel)
# ----------------------------------------------------------------------------
def pack_params(raw, hparams):
    assert hparams.state_based_value, \
        "TODO(synk): non-state-based path (x = policy embedding only) not implemented"
    layers = list(hparams.layers_size)
    latent = layers[0] // 2
    feat = layers[-1]
    L = len(layers) - 1                 # number of feature-extractor layers
    obs, ctx = hparams.obs_dim, hparams.context_dim
    IN = _rup(obs + ctx, 128)           # fused [state | policy] input width
    WPAD = _rup(max(layers), 128)       # uniform 128-lane-dense width

    def fold(w, bn):
        # inference BN folded into the (bias-free) Linear: W' = W*scale, b' = shift
        g, b, rm, rv = bn
        scale = g * jax.lax.rsqrt(rv + 1e-5)
        return w * scale[None, :], b - rm * scale

    ws1, bs1 = fold(raw["ws1"], raw["bns1"])
    ws2, bs2 = fold(raw["ws2"], raw["bns2"])
    wp1, bp1 = fold(raw["wp1"], raw["bnp1"])
    wp2, bp2 = fold(raw["wp2"], raw["bnp2"])
    wf, bf = [], []
    for i in range(L):
        w, b = fold(raw[f"wf{i + 1}"], raw[f"bnf{i + 1}"])
        wf.append(w)
        bf.append(b)

    # Block-diagonal embedder weights: output lanes [0:latent] = state path,
    # [latent:2*latent] = policy path (matches torch.cat([s, z], dim=-1)).
    emb1 = jnp.zeros((IN, WPAD), jnp.float32)
    emb1 = emb1.at[:obs, :latent].set(ws1)
    emb1 = emb1.at[obs:obs + ctx, latent:2 * latent].set(wp1)
    emb2 = jnp.zeros((WPAD, WPAD), jnp.float32)
    emb2 = emb2.at[:latent, :latent].set(ws2)
    emb2 = emb2.at[latent:2 * latent, latent:2 * latent].set(wp2)

    def pw(w):
        return jnp.pad(w, ((0, WPAD - w.shape[0]), (0, WPAD - w.shape[1])))

    blocks, offsets = [], {}

    def add(name, w):
        offsets[name] = sum(b.shape[0] for b in blocks)
        blocks.append(w)

    add("emb1", emb1)
    add("emb2", emb2)
    for i in range(L):
        add(f"wf{i + 1}", pw(wf[i]))
    add("wmu", pw(raw["wmu"]))
    W_slab = jnp.concatenate(blocks, axis=0).astype(jnp.bfloat16)

    def pb(*vs):
        v = jnp.concatenate(vs)
        return jnp.pad(v, (0, WPAD - v.shape[0]))

    brows = [pb(bs1, bp1), pb(bs2, bp2)] + [pb(b) for b in bf] + [pb(raw["bmu"])]
    NB = len(brows)
    B_slab = jnp.stack(brows, axis=0)
    B_slab = jnp.pad(B_slab, ((0, _rup(NB, 8) - NB), (0, 0))).astype(jnp.float32)

    params = {"W": W_slab, "B": B_slab, "wv": raw["wv"].astype(jnp.float32)}
    meta = dict(IN=IN, WPAD=WPAD, feat=feat, L=L, obs=obs, ctx=ctx, offs=offsets)
    return params, meta


# ----------------------------------------------------------------------------
# Fused forward kernel (one batch tile per grid step, all params VMEM-resident)
# ----------------------------------------------------------------------------
def _make_kernel(meta):
    IN, WPAD, feat, L = meta["IN"], meta["WPAD"], meta["feat"], meta["L"]
    o = meta["offs"]
    bf16, f32 = jnp.bfloat16, jnp.float32

    def kernel(x_ref, w_ref, b_ref, mu_ref):
        relu = lambda v: jnp.maximum(v, 0.0)

        def mm(x, off, rows):
            # bf16 x bf16 -> f32 accumulate on the MXU; static slab slice.
            return jnp.dot(x.astype(bf16), w_ref[off:off + rows, :],
                           preferred_element_type=f32)

        # ---- embedders (block-diagonal: lanes [0:latent]=s, [latent:2lat]=z)
        h = relu(mm(x_ref[...], o["emb1"], IN) + b_ref[0:1, :])
        h = relu(mm(h, o["emb2"], WPAD) + b_ref[1:2, :])     # = relu(cat([s, z]))

        # ---- feature extractor
        for li in range(L):
            h = relu(mm(h, o[f"wf{li + 1}"], WPAD) + b_ref[2 + li:3 + li, :])

        # ---- fc_mu + softmax over the first `feat` lanes (padded lanes masked)
        # (fc_var is computed-then-discarded by forward(); omitted here.)
        logits = mm(h, o["wmu"], WPAD) + b_ref[2 + L:3 + L, :]
        if feat < WPAD:
            lane = jax.lax.broadcasted_iota(jnp.int32, logits.shape, 1)
            logits = jnp.where(lane < feat, logits, -1e30)
        m = jnp.max(logits, axis=-1, keepdims=True)
        e = jnp.exp(logits - m)
        mu_ref[...] = e / jnp.sum(e, axis=-1, keepdims=True)

    return kernel


# ----------------------------------------------------------------------------
# Wrapper calling pallas_call
# ----------------------------------------------------------------------------
def bandit_forward(state, policy, params, meta):
    B = state.shape[0]
    IN, WPAD, feat = meta["IN"], meta["WPAD"], meta["feat"]
    obs, ctx = meta["obs"], meta["ctx"]

    # Batch tile: pad batch to a tile multiple; for large batches keep >= 2
    # grid steps so "parallel" can shard across both v7x TensorCores, and cap
    # the tile so double-buffered tiles + f32 temporaries stay well under the
    # scoped VMEM default on every generation.
    if B <= 256:
        TB = _rup(B, 8)
    else:
        TB = min(1024, _rup((B + 1) // 2, 8))
    Bp = _rup(B, TB)
    grid = (Bp // TB,)

    x = jnp.concatenate([state, policy], axis=1)
    x = jnp.pad(x, ((0, Bp - B), (0, IN - (obs + ctx))))

    mu_pad = pl.pallas_call(
        _make_kernel(meta),
        out_shape=jax.ShapeDtypeStruct((Bp, WPAD), jnp.float32),
        grid=grid,
        in_specs=[
            pl.BlockSpec((TB, IN), lambda i: (i, 0)),            # fused [state|policy] tile
            pl.BlockSpec(params["W"].shape, lambda i: (0, 0)),   # packed weights (resident)
            pl.BlockSpec(params["B"].shape, lambda i: (0, 0)),   # packed biases (resident)
        ],
        out_specs=pl.BlockSpec((TB, WPAD), lambda i: (i, 0)),    # lane-dense mu slab
        compiler_params=pltpu.CompilerParams(
            dimension_semantics=("parallel",)),
    )(x, params["W"], params["B"])

    mu = mu_pad[:B, :feat]
    # value_pred + google_nonlinear: O(B) work, done outside the kernel so the
    # kernel has no 1-lane-wide (all-masked) output stream.
    v = mu @ params["wv"]
    value = jnp.sign(v) * (jnp.sqrt(jnp.abs(v) + 1.0) - 1.0) + 0.001 * v
    return value, mu


# ----------------------------------------------------------------------------
# Pure-JAX f32 reference (unfolded BN, explicit concat) for correctness check
# ----------------------------------------------------------------------------
def bandit_forward_ref(state, policy, raw, hparams):
    def bn(x, p, eps=1e-5):
        g, b, rm, rv = p
        return (x - rm) * jax.lax.rsqrt(rv + eps) * g + b

    relu = lambda x: jnp.maximum(x, 0.0)
    z = bn(policy @ raw["wp1"], raw["bnp1"])
    z = bn(relu(z) @ raw["wp2"], raw["bnp2"])
    s = bn(state @ raw["ws1"], raw["bns1"])
    s = bn(relu(s) @ raw["ws2"], raw["bns2"])
    y = relu(jnp.concatenate([s, z], axis=-1))
    for i in range(len(hparams.layers_size) - 1):
        y = relu(bn(y @ raw[f"wf{i + 1}"], raw[f"bnf{i + 1}"]))
    mu = jax.nn.softmax(y @ raw["wmu"] + raw["bmu"], axis=-1)
    v = mu @ raw["wv"]
    v = jnp.sign(v) * (jnp.sqrt(jnp.abs(v) + 1.0) - 1.0) + 0.001 * v
    return v, mu


if __name__ == "__main__":
    hparams = SimpleNamespace(
        state_based_value=True,
        layers_size=[64, 64, 64],   # latent_dim = 64 // 2 = 32
        context_dim=16,
        obs_dim=16,
    )
    B = 8
    key = jax.random.PRNGKey(0)
    kp, ks, kpol = jax.random.split(key, 3)

    raw = init_raw_params(hparams, kp)
    params, meta = pack_params(raw, hparams)

    state = jax.random.normal(ks, (B, hparams.obs_dim), jnp.float32)
    policy = jax.random.normal(kpol, (B, hparams.context_dim), jnp.float32)

    value, mu = bandit_forward(state, policy, params, meta)
    value, mu = jax.block_until_ready((value, mu))

    v_exp, mu_exp = bandit_forward_ref(state, policy, raw, hparams)
    assert value.shape == (B, 1) and mu.shape == (B, hparams.layers_size[-1])
    # tolerances account for bf16 MXU weights with folded BN scales
    assert jnp.allclose(mu, mu_exp, atol=2e-2, rtol=2e-2), \
        float(jnp.max(jnp.abs(mu - mu_exp)))
    assert jnp.allclose(value, v_exp, atol=2e-2, rtol=2e-2), \
        float(jnp.max(jnp.abs(value - v_exp)))

    print("KERNEL_OK")
</pallas_src>

<mosaic_0001>
module attributes {stable_mosaic.version = 11 : i64} {
  func.func @kernel(%arg0: i32, %arg1: memref<8x128xf32, #tpu.memory_space<vmem>>, %arg2: memref<640x128xbf16, #tpu.memory_space<vmem>>, %arg3: memref<8x128xf32, #tpu.memory_space<vmem>>, %arg4: memref<8x128xf32, #tpu.memory_space<vmem>>) attributes {dimension_semantics = [#tpu.dimension_semantics<parallel>], iteration_bounds = array<i64: 1>, scalar_prefetch = 0 : i64, scratch_operands = 0 : i64, tpu.core_type = #tpu.core_type<tc>, window_params = [{transform_indices = @transform_0, window_bounds = array<i64: 8, 128>}, {pipeline_mode = #tpu.pipeline_mode<synchronous>, transform_indices = @transform_1, window_bounds = array<i64: 640, 128>}, {pipeline_mode = #tpu.pipeline_mode<synchronous>, transform_indices = @transform_2, window_bounds = array<i64: 8, 128>}, {transform_indices = @transform_3, window_bounds = array<i64: 8, 128>}]} {
    %c0 = arith.constant 0 : index
    %c0_0 = arith.constant 0 : index
    %0 = vector.load %arg1[%c0, %c0_0] : memref<8x128xf32, #tpu.memory_space<vmem>>, vector<8x128xf32>
    %1 = arith.truncf %0 : vector<8x128xf32> to vector<8x128xbf16>
    %c0_1 = arith.constant 0 : index
    %c0_2 = arith.constant 0 : index
    %2 = vector.load %arg2[%c0_1, %c0_2] : memref<640x128xbf16, #tpu.memory_space<vmem>>, vector<128x128xbf16>
    %cst = arith.constant dense<0.000000e+00> : vector<8x128xf32>
    %3 = tpu.matmul %1, %2, %cst {dimension_numbers = #tpu.dot_dimension_numbers<[1], [0], [0], [1], [0, 0, 1, 1], [], []>} : vector<8x128xbf16>, vector<128x128xbf16>, vector<8x128xf32> -> vector<8x128xf32>
    %c0_3 = arith.constant 0 : index
    %c0_4 = arith.constant 0 : index
    %4 = vector.load %arg3[%c0_3, %c0_4] : memref<8x128xf32, #tpu.memory_space<vmem>>, vector<1x128xf32>
    %5 = vector.broadcast %4 : vector<1x128xf32> to vector<8x128xf32>
    %6 = arith.addf %3, %5 : vector<8x128xf32>
    %cst_5 = arith.constant 0.000000e+00 : f32
    %7 = vector.broadcast %cst_5 : f32 to vector<8x128xf32>
    %8 = arith.maximumf %6, %7 : vector<8x128xf32>
    %9 = arith.truncf %8 : vector<8x128xf32> to vector<8x128xbf16>
    %c128 = arith.constant 128 : index
    %c0_6 = arith.constant 0 : index
    %10 = vector.load %arg2[%c128, %c0_6] : memref<640x128xbf16, #tpu.memory_space<vmem>>, vector<128x128xbf16>
    %cst_7 = arith.constant dense<0.000000e+00> : vector<8x128xf32>
    %11 = tpu.matmul %9, %10, %cst_7 {dimension_numbers = #tpu.dot_dimension_numbers<[1], [0], [0], [1], [0, 0, 1, 1], [], []>} : vector<8x128xbf16>, vector<128x128xbf16>, vector<8x128xf32> -> vector<8x128xf32>
    %c1 = arith.constant 1 : index
    %c0_8 = arith.constant 0 : index
    %12 = vector.load %arg3[%c1, %c0_8] : memref<8x128xf32, #tpu.memory_space<vmem>>, vector<1x128xf32>
    %13 = vector.broadcast %12 : vector<1x128xf32> to vector<8x128xf32>
    %14 = arith.addf %11, %13 : vector<8x128xf32>
    %cst_9 = arith.constant 0.000000e+00 : f32
    %15 = vector.broadcast %cst_9 : f32 to vector<8x128xf32>
    %16 = arith.maximumf %14, %15 : vector<8x128xf32>
    %17 = arith.truncf %16 : vector<8x128xf32> to vector<8x128xbf16>
    %c256 = arith.constant 256 : index
    %c0_10 = arith.constant 0 : index
    %18 = vector.load %arg2[%c256, %c0_10] : memref<640x128xbf16, #tpu.memory_space<vmem>>, vector<128x128xbf16>
    %cst_11 = arith.constant dense<0.000000e+00> : vector<8x128xf32>
    %19 = tpu.matmul %17, %18, %cst_11 {dimension_numbers = #tpu.dot_dimension_numbers<[1], [0], [0], [1], [0, 0, 1, 1], [], []>} : vector<8x128xbf16>, vector<128x128xbf16>, vector<8x128xf32> -> vector<8x128xf32>
    %c2 = arith.constant 2 : index
    %c0_12 = arith.constant 0 : index
    %20 = vector.load %arg3[%c2, %c0_12] : memref<8x128xf32, #tpu.memory_space<vmem>>, vector<1x128xf32>
    %21 = vector.broadcast %20 : vector<1x128xf32> to vector<8x128xf32>
    %22 = arith.addf %19, %21 : vector<8x128xf32>
    %cst_13 = arith.constant 0.000000e+00 : f32
    %23 = vector.broadcast %cst_13 : f32 to vector<8x128xf32>
    %24 = arith.maximumf %22, %23 : vector<8x128xf32>
    %25 = arith.truncf %24 : vector<8x128xf32> to vector<8x128xbf16>
    %c384 = arith.constant 384 : index
    %c0_14 = arith.constant 0 : index
    %26 = vector.load %arg2[%c384, %c0_14] : memref<640x128xbf16, #tpu.memory_space<vmem>>, vector<128x128xbf16>
    %cst_15 = arith.constant dense<0.000000e+00> : vector<8x128xf32>
    %27 = tpu.matmul %25, %26, %cst_15 {dimension_numbers = #tpu.dot_dimension_numbers<[1], [0], [0], [1], [0, 0, 1, 1], [], []>} : vector<8x128xbf16>, vector<128x128xbf16>, vector<8x128xf32> -> vector<8x128xf32>
    %c3 = arith.constant 3 : index
    %c0_16 = arith.constant 0 : index
    %28 = vector.load %arg3[%c3, %c0_16] : memref<8x128xf32, #tpu.memory_space<vmem>>, vector<1x128xf32>
    %29 = vector.broadcast %28 : vector<1x128xf32> to vector<8x128xf32>
    %30 = arith.addf %27, %29 : vector<8x128xf32>
    %cst_17 = arith.constant 0.000000e+00 : f32
    %31 = vector.broadcast %cst_17 : f32 to vector<8x128xf32>
    %32 = arith.maximumf %30, %31 : vector<8x128xf32>
    %33 = arith.truncf %32 : vector<8x128xf32> to vector<8x128xbf16>
    %c512 = arith.constant 512 : index
    %c0_18 = arith.constant 0 : index
    %34 = vector.load %arg2[%c512, %c0_18] : memref<640x128xbf16, #tpu.memory_space<vmem>>, vector<128x128xbf16>
    %cst_19 = arith.constant dense<0.000000e+00> : vector<8x128xf32>
    %35 = tpu.matmul %33, %34, %cst_19 {dimension_numbers = #tpu.dot_dimension_numbers<[1], [0], [0], [1], [0, 0, 1, 1], [], []>} : vector<8x128xbf16>, vector<128x128xbf16>, vector<8x128xf32> -> vector<8x128xf32>
    %c4 = arith.constant 4 : index
    %c0_20 = arith.constant 0 : index
    %36 = vector.load %arg3[%c4, %c0_20] : memref<8x128xf32, #tpu.memory_space<vmem>>, vector<1x128xf32>
    %37 = vector.broadcast %36 : vector<1x128xf32> to vector<8x128xf32>
    %38 = arith.addf %35, %37 : vector<8x128xf32>
    %39 = tpu.iota {dimensions = array<i32: 1>} : vector<8x128xi32>
    %c64_i32 = arith.constant 64 : i32
    %40 = vector.broadcast %c64_i32 : i32 to vector<8x128xi32>
    %41 = arith.cmpi slt, %39, %40 : vector<8x128xi32>
    %cst_21 = arith.constant -1.000000e+30 : f32
    %42 = vector.broadcast %cst_21 : f32 to vector<8x128xf32>
    %43 = arith.select %41, %38, %42 : vector<8x128xi1>, vector<8x128xf32>
    %cst_22 = arith.constant dense<0xFF800000> : vector<8xf32>
    %44 = vector.multi_reduction <maximumf>, %43, %cst_22 [1] : vector<8x128xf32> to vector<8xf32>
    %45 = vector.shape_cast %44 : vector<8xf32> to vector<8x1xf32>
    %46 = vector.broadcast %45 : vector<8x1xf32> to vector<8x128xf32>
    %47 = arith.subf %43, %46 : vector<8x128xf32>
    %48 = math.exp %47 : vector<8x128xf32>
    %cst_23 = arith.constant dense<0.000000e+00> : vector<8xf32>
    %49 = vector.multi_reduction <add>, %48, %cst_23 [1] : vector<8x128xf32> to vector<8xf32>
    %50 = vector.shape_cast %49 : vector<8xf32> to vector<8x1xf32>
    %51 = vector.broadcast %50 : vector<8x1xf32> to vector<8x128xf32>
    %52 = arith.divf %48, %51 : vector<8x128xf32>
    %c0_24 = arith.constant 0 : index
    %c0_25 = arith.constant 0 : index
    %53 = vector.load %arg4[%c0_24, %c0_25] : memref<8x128xf32, #tpu.memory_space<vmem>>, vector<8x128xf32>
    tpu.vector_store %arg4[%c0_24, %c0_25], %52 {strides = array<i32>} : memref<8x128xf32, #tpu.memory_space<vmem>>, vector<8x128xf32>,
    return
  }
  func.func @transform_0(%arg0: i32) -> (i32, i32) {
    %c0_i32 = arith.constant 0 : i32
    %c0_i32_0 = arith.constant 0 : i32
    return %arg0, %c0_i32 : i32, i32
  }
  func.func @transform_1(%arg0: i32) -> (i32, i32) {
    %c0_i32 = arith.constant 0 : i32
    %c0_i32_0 = arith.constant 0 : i32
    %c0_i32_1 = arith.constant 0 : i32
    return %c0_i32, %c0_i32_0 : i32, i32
  }
  func.func @transform_2(%arg0: i32) -> (i32, i32) {
    %c0_i32 = arith.constant 0 : i32
    %c0_i32_0 = arith.constant 0 : i32
    %c0_i32_1 = arith.constant 0 : i32
    return %c0_i32, %c0_i32_0 : i32, i32
  }
  func.func @transform_3(%arg0: i32) -> (i32, i32) {
    %c0_i32 = arith.constant 0 : i32
    %c0_i32_0 = arith.constant 0 : i32
    return %arg0, %c0_i32 : i32, i32
  }
}

</mosaic_0001>

<llo_original>
// kernel: tpu_custom_call.1
$region0: #{tpu_custom_call.1}
  #allocation0 [shape = 'u32[]', space=smem, size = 0x4, offset = 0x4, fixed_abs, tag = 'smem constant byte address 0x4 - core index']
  #allocation1 [shape = 'u32[144,128]{1,0:T(1,128)}', space=vmem, size = 0x12000, scoped, tag = 'internal scratch']
  %s0 = inlined_call_operand.hbm [shape: f32[8,128], index: 0, kind: input, shape index: {}]
  %s1 = inlined_call_operand.hbm [shape: bf16[640,128], index: 1, kind: input, shape index: {}]
  %s2 = inlined_call_operand.hbm [shape: f32[8,128], index: 2, kind: input, shape index: {}]
  %s3 = inlined_call_operand.hbm [shape: f32[8,128], index: 3, kind: output, shape index: {}]
  %s4 = sld [smem:[#allocation0]]
  $region34: #{tpu_custom_call.1} parent=0
    _
  %s6 = ssub.s32 1, %s4
  %s7 = scalar_select 0, %s6, %s4
  $region1: #{tpu_custom_call.1} parent=0
    #allocation2 [shape = 'u8[4096]{0}', space=vmem, size = 0x1000, scoped, tag = 'input window, operand 0, single buffered']
    #allocation3 [shape = 's32[1]{0}', space=sflag, size = 0x4, scoped, tag = 'scoped memory for tpu_custom_call.1']
    #allocation4 [shape = 's32[1]{0}', space=sflag, size = 0x4, scoped, tag = 'scoped memory for tpu_custom_call.1']
    #allocation5 [shape = 'u8[163840]{0}', space=vmem, size = 0x28000, scoped, tag = 'input window, operand 1, single buffered']
    #allocation6 [shape = 's32[1]{0}', space=sflag, size = 0x4, scoped, tag = 'scoped memory for tpu_custom_call.1']
    #allocation7 [shape = 'u8[4096]{0}', space=vmem, size = 0x1000, scoped, tag = 'input window, operand 2, single buffered']
    #allocation8 [shape = 'u8[4096]{0}', space=vmem, size = 0x1000, scoped, tag = 'output window, operand 0, single buffered']
    %8 = vsyncpa [#allocation3], 0
    %9 = vsyncpa [#allocation6], 0
    %10 = vsyncpa [#allocation4], 0
    // Predicated region
    $region2: #{tpu_custom_call.1} parent=1 // pred_check
      _
    $region3: #{tpu_custom_call.1} parent=1 // pred_check_branch
      %12 = sbr.rel (0) target = $region5
    $region4: #{tpu_custom_call.1} parent=1 // pred_region
      %s14 = ssub.s32 128, 128
      %15 = vsyncadd [#allocation3], %s14
      %s17 = sshll.u32 [#allocation2], 4
      %s18 = int_to_ptr.vmem [resolvable:$true] %s17
      %20 = dma.hbm_to_vmem [thread:$0]  %s0, 128, %s18, [#allocation3]
    $region5: #{tpu_custom_call.1} parent=1 // pred_fallthru
      _
    // Predicated region
    $region6: #{tpu_custom_call.1} parent=1 // pred_check
      _
    $region7: #{tpu_custom_call.1} parent=1 // pred_check_branch
      %22 = sbr.rel (0) target = $region9
    $region8: #{tpu_custom_call.1} parent=1 // pred_region
      %s24 = ssub.s32 5120, 5120
      %25 = vsyncadd [#allocation6], %s24
      %s26 = sshll.u32 [#allocation5], 4
      %s27 = int_to_ptr.vmem [resolvable:$true] %s26
      %32 = dma.hbm_to_vmem [thread:$0]  %s1, 5120, %s27, [#allocation6], 64, 64, 4
    $region9: #{tpu_custom_call.1} parent=1 // pred_fallthru
      _
    // Predicated region
    $region10: #{tpu_custom_call.1} parent=1 // pred_check
      _
    $region11: #{tpu_custom_call.1} parent=1 // pred_check_branch
      %34 = sbr.rel (0) target = $region13
    $region12: #{tpu_custom_call.1} parent=1 // pred_region
      %s36 = ssub.s32 128, 128
      %37 = vsyncadd [#allocation6], %s36
      %s39 = sshll.u32 [#allocation7], 4
      %s40 = int_to_ptr.vmem [resolvable:$true] %s39
      %42 = dma.hbm_to_vmem [thread:$0]  %s2, 128, %s40, [#allocation6]
    $region13: #{tpu_custom_call.1} parent=1 // pred_fallthru
      _
    // Predicated region
    $region14: #{tpu_custom_call.1} parent=1 // pred_check
      _
    $region15: #{tpu_custom_call.1} parent=1 // pred_check_branch
      %44 = sbr.rel (0) target = $region17
    $region16: #{tpu_custom_call.1} parent=1 // pred_region
      %45 = dma.done [#allocation3], 128
    $region17: #{tpu_custom_call.1} parent=1 // pred_fallthru
      _
    // Predicated region
    $region18: #{tpu_custom_call.1} parent=1 // pred_check
      _
    $region19: #{tpu_custom_call.1} parent=1 // pred_check_branch
      %47 = sbr.rel (0) target = $region21
    $region20: #{tpu_custom_call.1} parent=1 // pred_region
      %48 = dma.done [#allocation6], 5120
    $region21: #{tpu_custom_call.1} parent=1 // pred_fallthru
      _
    // Predicated region
    $region22: #{tpu_custom_call.1} parent=1 // pred_check
      _
    $region23: #{tpu_custom_call.1} parent=1 // pred_check_branch
      %50 = sbr.rel (0) target = $region25
    $region24: #{tpu_custom_call.1} parent=1 // pred_region
      %51 = dma.done [#allocation6], 128
    $region25: #{tpu_custom_call.1} parent=1 // pred_fallthru
      _
    %v53 = vld [vmem:[#allocation2] sm:$0xff]
    %v54 = vpack.c.bf16 %v53, %v53
    %v55 = vld [vmem:[#allocation5] sm:$0xf]
    %v56 = vld [vmem:[#allocation5 + $0x4] sm:$0xf]
    %v57 = vld [vmem:[#allocation5 + $0x8] sm:$0xf]
    %v58 = vld [vmem:[#allocation5 + $0xc] sm:$0xf]
    %v59 = vld [vmem:[#allocation5 + $0x10] sm:$0xf]
    %v60 = vld [vmem:[#allocation5 + $0x14] sm:$0xf]
    %v61 = vld [vmem:[#allocation5 + $0x18] sm:$0xf]
    %v62 = vld [vmem:[#allocation5 + $0x1c] sm:$0xf]
    %v63 = vld [vmem:[#allocation5 + $0x20] sm:$0xf]
    %v64 = vld [vmem:[#allocation5 + $0x24] sm:$0xf]
    %v65 = vld [vmem:[#allocation5 + $0x28] sm:$0xf]
    %v66 = vld [vmem:[#allocation5 + $0x2c] sm:$0xf]
    %v67 = vld [vmem:[#allocation5 + $0x30] sm:$0xf]
    %v68 = vld [vmem:[#allocation5 + $0x34] sm:$0xf]
    %v69 = vld [vmem:[#allocation5 + $0x38] sm:$0xf]
    %v70 = vld [vmem:[#allocation5 + $0x3c] sm:$0xf]
    %v71 = vld [vmem:[#allocation7] sm:$0x1]
    %v72 = vlaneseq
    %v73 = vshrl.u32 %v72, 7
    %v74 = vsub.s32 0, %v73
    %v75 = vrot.slane %v71, %v74
    %v92 = vunpack.c.l.b16 %v55
    %v93 = vunpack.c.l.b16 %v56
    %v94 = vunpack.c.l.b16 %v57
    %v95 = vunpack.c.l.b16 %v58
    %v96 = vunpack.c.l.b16 %v59
    %v97 = vunpack.c.l.b16 %v60
    %v98 = vunpack.c.l.b16 %v61
    %v99 = vunpack.c.l.b16 %v62
    %v100 = vunpack.c.l.b16 %v63
    %v101 = vunpack.c.l.b16 %v64
    %v102 = vunpack.c.l.b16 %v65
    %v103 = vunpack.c.l.b16 %v66
    %v104 = vunpack.c.l.b16 %v67
    %v105 = vunpack.c.l.b16 %v68
    %v106 = vunpack.c.l.b16 %v69
    %v107 = vunpack.c.l.b16 %v70
    %v108 = vpack.c.b16 %v93, %v92
    %v109 = vpack.c.b16 %v95, %v94
    %v110 = vpack.c.b16 %v97, %v96
    %v111 = vpack.c.b16 %v99, %v98
    %v112 = vpack.c.b16 %v101, %v100
    %v113 = vpack.c.b16 %v103, %v102
    %v114 = vpack.c.b16 %v105, %v104
    %v115 = vpack.c.b16 %v107, %v106
    %124 = vmatprep.subr.bf16.mxu0 0
    %125 = vmatpush1.bf16.msra.mxu0 %v115
    %126 = vmatprep.subr.bf16.mxu0 0
    %127 = vmatpush1.bf16.msra.mxu0 %v114
    %128 = vmatprep.subr.bf16.mxu0 0
    %129 = vmatpush1.bf16.msra.mxu0 %v113
    %130 = vmatprep.subr.bf16.mxu0 0
    %131 = vmatpush1.bf16.msra.mxu0 %v112
    %132 = vmatprep.subr.bf16.mxu0 0
    %133 = vmatpush1.bf16.msra.mxu0 %v111
    %134 = vmatprep.subr.bf16.mxu0 0
    %135 = vmatpush1.bf16.msra.mxu0 %v110
    %136 = vmatprep.subr.bf16.mxu0 0
    %137 = vmatpush1.bf16.msra.mxu0 %v109
    %138 = vmatprep.subr.bf16.mxu0 0
    %139 = vmatpush1.bf16.msra.mxu0 %v108
    %140 = vmatprep.subr.bf16.mxu0 0
    %141 = vmatpush2.bf16.msra.mxu0 0
    %142 = vmatprep.subr.bf16.mxu0 0
    %143 = vmatpush2.bf16.msra.mxu0 0
    %144 = vmatprep.subr.bf16.mxu0 0
    %145 = vmatpush2.bf16.msra.mxu0 0
    %146 = vmatprep.subr.bf16.mxu0 0
    %147 = vmatpush2.bf16.msra.mxu0 0
    %148 = vmatprep.subr.bf16.mxu0 0
    %149 = vmatpush2.bf16.msra.mxu0 0
    %150 = vmatprep.subr.bf16.mxu0 0
    %151 = vmatpush2.bf16.msra.mxu0 0
    %152 = vmatprep.subr.bf16.mxu0 0
    %153 = vmatpush2.bf16.msra.mxu0 0
    %154 = vmatprep.subr.bf16.mxu0 0
    %155 = vmatpush2.bf16.msra.mxu0 0
    %156 = vmatprep.mubr.bf16.mxu0 0
    %157 = vmatmul.mubr.bf16.gmra.mxu0 %v54
    %v158 = vpop.f32.mrf.mxu0
    %v159 = vadd.f32 %v75, %v158
    %v160 = vpop.f32.mrf.mxu0
    %v161 = vpop.f32.mrf.mxu0
    %v162 = vpop.f32.mrf.mxu0
    %163 = vdwg.mxu0
    %v164 = vmax.f32 %v159, 0.0
    %v165 = vpack.c.bf16 %v164, %v164
    %v166 = vld [vmem:[#allocation5 + $0x40] sm:$0xf]
    %v167 = vld [vmem:[#allocation5 + $0x44] sm:$0xf]
    %v168 = vld [vmem:[#allocation5 + $0x48] sm:$0xf]
    %v169 = vld [vmem:[#allocation5 + $0x4c] sm:$0xf]
    %v170 = vld [vmem:[#allocation5 + $0x50] sm:$0xf]
    %v171 = vld [vmem:[#allocation5 + $0x54] sm:$0xf]
    %v172 = vld [vmem:[#allocation5 + $0x58] sm:$0xf]
    %v173 = vld [vmem:[#allocation5 + $0x5c] sm:$0xf]
    %v174 = vld [vmem:[#allocation5 + $0x60] sm:$0xf]
    %v175 = vld [vmem:[#allocation5 + $0x64] sm:$0xf]
    %v176 = vld [vmem:[#allocation5 + $0x68] sm:$0xf]
    %v177 = vld [vmem:[#allocation5 + $0x6c] sm:$0xf]
    %v178 = vld [vmem:[#allocation5 + $0x70] sm:$0xf]
    %v179 = vld [vmem:[#allocation5 + $0x74] sm:$0xf]
    %v180 = vld [vmem:[#allocation5 + $0x78] sm:$0xf]
    %v181 = vld [vmem:[#allocation5 + $0x7c] sm:$0xf]
    %v182 = vld [vmem:[#allocation7 + $0x1] sm:$0x1]
    %v183 = vlaneseq
    %v184 = vshrl.u32 %v183, 7
    %v185 = vsub.s32 0, %v184
    %v186 = vrot.slane %v182, %v185
    %v203 = vunpack.c.l.b16 %v166
    %v204 = vunpack.c.l.b16 %v167
    %v205 = vunpack.c.l.b16 %v168
    %v206 = vunpack.c.l.b16 %v169
    %v207 = vunpack.c.l.b16 %v170
    %v208 = vunpack.c.l.b16 %v171
    %v209 = vunpack.c.l.b16 %v172
    %v210 = vunpack.c.l.b16 %v173
    %v211 = vunpack.c.l.b16 %v174
    %v212 = vunpack.c.l.b16 %v175
    %v213 = vunpack.c.l.b16 %v176
    %v214 = vunpack.c.l.b16 %v177
    %v215 = vunpack.c.l.b16 %v178
    %v216 = vunpack.c.l.b16 %v179
    %v217 = vunpack.c.l.b16 %v180
    %v218 = vunpack.c.l.b16 %v181
    %v219 = vpack.c.b16 %v204, %v203
    %v220 = vpack.c.b16 %v206, %v205
    %v221 = vpack.c.b16 %v208, %v207
    %v222 = vpack.c.b16 %v210, %v209
    %v223 = vpack.c.b16 %v212, %v211
    %v224 = vpack.c.b16 %v214, %v213
    %v225 = vpack.c.b16 %v216, %v215
    %v226 = vpack.c.b16 %v218, %v217
    %235 = vmatprep.subr.bf16.mxu0 0
    %236 = vmatpush1.bf16.msra.mxu0 %v226
    %237 = vmatprep.subr.bf16.mxu0 0
    %238 = vmatpush1.bf16.msra.mxu0 %v225
    %239 = vmatprep.subr.bf16.mxu0 0
    %240 = vmatpush1.bf16.msra.mxu0 %v224
    %241 = vmatprep.subr.bf16.mxu0 0
    %242 = vmatpush1.bf16.msra.mxu0 %v223
    %243 = vmatprep.subr.bf16.mxu0 0
    %244 = vmatpush1.bf16.msra.mxu0 %v222
    %245 = vmatprep.subr.bf16.mxu0 0
    %246 = vmatpush1.bf16.msra.mxu0 %v221
    %247 = vmatprep.subr.bf16.mxu0 0
    %248 = vmatpush1.bf16.msra.mxu0 %v220
    %249 = vmatprep.subr.bf16.mxu0 0
    %250 = vmatpush1.bf16.msra.mxu0 %v219
    %251 = vmatprep.subr.bf16.mxu0 0
    %252 = vmatpush2.bf16.msra.mxu0 0
    %253 = vmatprep.subr.bf16.mxu0 0
    %254 = vmatpush2.bf16.msra.mxu0 0
    %255 = vmatprep.subr.bf16.mxu0 0
    %256 = vmatpush2.bf16.msra.mxu0 0
    %257 = vmatprep.subr.bf16.mxu0 0
    %258 = vmatpush2.bf16.msra.mxu0 0
    %259 = vmatprep.subr.bf16.mxu0 0
    %260 = vmatpush2.bf16.msra.mxu0 0
    %261 = vmatprep.subr.bf16.mxu0 0
    %262 = vmatpush2.bf16.msra.mxu0 0
    %263 = vmatprep.subr.bf16.mxu0 0
    %264 = vmatpush2.bf16.msra.mxu0 0
    %265 = vmatprep.subr.bf16.mxu0 0
    %266 = vmatpush2.bf16.msra.mxu0 0
    %267 = vmatprep.mubr.bf16.mxu0 0
    %268 = vmatmul.mubr.bf16.gmra.mxu0 %v165
    %v269 = vpop.f32.mrf.mxu0
    %v270 = vadd.f32 %v186, %v269
    %v271 = vpop.f32.mrf.mxu0
    %v272 = vpop.f32.mrf.mxu0
    %v273 = vpop.f32.mrf.mxu0
    %274 = vdwg.mxu0
    %v275 = vmax.f32 %v270, 0.0
    %v276 = vpack.c.bf16 %v275, %v275
    %v277 = vld [vmem:[#allocation5 + $0x80] sm:$0xf]
    %v278 = vld [vmem:[#allocation5 + $0x84] sm:$0xf]
    %v279 = vld [vmem:[#allocation5 + $0x88] sm:$0xf]
    %v280 = vld [vmem:[#allocation5 + $0x8c] sm:$0xf]
    %v281 = vld [vmem:[#allocation5 + $0x90] sm:$0xf]
    %v282 = vld [vmem:[#allocation5 + $0x94] sm:$0xf]
    %v283 = vld [vmem:[#allocation5 + $0x98] sm:$0xf]
    %v284 = vld [vmem:[#allocation5 + $0x9c] sm:$0xf]
    %v285 = vld [vmem:[#allocation5 + $0xa0] sm:$0xf]
    %v286 = vld [vmem:[#allocation5 + $0xa4] sm:$0xf]
    %v287 = vld [vmem:[#allocation5 + $0xa8] sm:$0xf]
    %v288 = vld [vmem:[#allocation5 + $0xac] sm:$0xf]
    %v289 = vld [vmem:[#allocation5 + $0xb0] sm:$0xf]
    %v290 = vld [vmem:[#allocation5 + $0xb4] sm:$0xf]
    %v291 = vld [vmem:[#allocation5 + $0xb8] sm:$0xf]
    %v292 = vld [vmem:[#allocation5 + $0xbc] sm:$0xf]
    %v293 = vld [vmem:[#allocation7 + $0x2] sm:$0x1]
    %v294 = vlaneseq
    %v295 = vshrl.u32 %v294, 7
    %v296 = vsub.s32 0, %v295
    %v297 = vrot.slane %v293, %v296
    %v314 = vunpack.c.l.b16 %v277
    %v315 = vunpack.c.l.b16 %v278
    %v316 = vunpack.c.l.b16 %v279
    %v317 = vunpack.c.l.b16 %v280
    %v318 = vunpack.c.l.b16 %v281
    %v319 = vunpack.c.l.b16 %v282
    %v320 = vunpack.c.l.b16 %v283
    %v321 = vunpack.c.l.b16 %v284
    %v322 = vunpack.c.l.b16 %v285
    %v323 = vunpack.c.l.b16 %v286
    %v324 = vunpack.c.l.b16 %v287
    %v325 = vunpack.c.l.b16 %v288
    %v326 = vunpack.c.l.b16 %v289
    %v327 = vunpack.c.l.b16 %v290
    %v328 = vunpack.c.l.b16 %v291
    %v329 = vunpack.c.l.b16 %v292
    %v330 = vpack.c.b16 %v315, %v314
    %v331 = vpack.c.b16 %v317, %v316
    %v332 = vpack.c.b16 %v319, %v318
    %v333 = vpack.c.b16 %v321, %v320
    %v334 = vpack.c.b16 %v323, %v322
    %v335 = vpack.c.b16 %v325, %v324
    %v336 = vpack.c.b16 %v327, %v326
    %v337 = vpack.c.b16 %v329, %v328
    %346 = vmatprep.subr.bf16.mxu0 0
    %347 = vmatpush1.bf16.msra.mxu0 %v337
    %348 = vmatprep.subr.bf16.mxu0 0
    %349 = vmatpush1.bf16.msra.mxu0 %v336
    %350 = vmatprep.subr.bf16.mxu0 0
    %351 = vmatpush1.bf16.msra.mxu0 %v335
    %352 = vmatprep.subr.bf16.mxu0 0
    %353 = vmatpush1.bf16.msra.mxu0 %v334
    %354 = vmatprep.subr.bf16.mxu0 0
    %355 = vmatpush1.bf16.msra.mxu0 %v333
    %356 = vmatprep.subr.bf16.mxu0 0
    %357 = vmatpush1.bf16.msra.mxu0 %v332
    %358 = vmatprep.subr.bf16.mxu0 0
    %359 = vmatpush1.bf16.msra.mxu0 %v331
    %360 = vmatprep.subr.bf16.mxu0 0
    %361 = vmatpush1.bf16.msra.mxu0 %v330
    %362 = vmatprep.subr.bf16.mxu0 0
    %363 = vmatpush2.bf16.msra.mxu0 0
    %364 = vmatprep.subr.bf16.mxu0 0
    %365 = vmatpush2.bf16.msra.mxu0 0
    %366 = vmatprep.subr.bf16.mxu0 0
    %367 = vmatpush2.bf16.msra.mxu0 0
    %368 = vmatprep.subr.bf16.mxu0 0
    %369 = vmatpush2.bf16.msra.mxu0 0
    %370 = vmatprep.subr.bf16.mxu0 0
    %371 = vmatpush2.bf16.msra.mxu0 0
    %372 = vmatprep.subr.bf16.mxu0 0
    %373 = vmatpush2.bf16.msra.mxu0 0
    %374 = vmatprep.subr.bf16.mxu0 0
    %375 = vmatpush2.bf16.msra.mxu0 0
    %376 = vmatprep.subr.bf16.mxu0 0
    %377 = vmatpush2.bf16.msra.mxu0 0
    %378 = vmatprep.mubr.bf16.mxu0 0
    %379 = vmatmul.mubr.bf16.gmra.mxu0 %v276
    %v380 = vpop.f32.mrf.mxu0
    %v381 = vadd.f32 %v297, %v380
    %v382 = vpop.f32.mrf.mxu0
    %v383 = vpop.f32.mrf.mxu0
    %v384 = vpop.f32.mrf.mxu0
    %385 = vdwg.mxu0
    %v386 = vmax.f32 %v381, 0.0
    %v387 = vpack.c.bf16 %v386, %v386
    %v388 = vld [vmem:[#allocation5 + $0xc0] sm:$0xf]
    %v389 = vld [vmem:[#allocation5 + $0xc4] sm:$0xf]
    %v390 = vld [vmem:[#allocation5 + $0xc8] sm:$0xf]
    %v391 = vld [vmem:[#allocation5 + $0xcc] sm:$0xf]
    %v392 = vld [vmem:[#allocation5 + $0xd0] sm:$0xf]
    %v393 = vld [vmem:[#allocation5 + $0xd4] sm:$0xf]
    %v394 = vld [vmem:[#allocation5 + $0xd8] sm:$0xf]
    %v395 = vld [vmem:[#allocation5 + $0xdc] sm:$0xf]
    %v396 = vld [vmem:[#allocation5 + $0xe0] sm:$0xf]
    %v397 = vld [vmem:[#allocation5 + $0xe4] sm:$0xf]
    %v398 = vld [vmem:[#allocation5 + $0xe8] sm:$0xf]
    %v399 = vld [vmem:[#allocation5 + $0xec] sm:$0xf]
    %v400 = vld [vmem:[#allocation5 + $0xf0] sm:$0xf]
    %v401 = vld [vmem:[#allocation5 + $0xf4] sm:$0xf]
    %v402 = vld [vmem:[#allocation5 + $0xf8] sm:$0xf]
    %v403 = vld [vmem:[#allocation5 + $0xfc] sm:$0xf]
    %v404 = vld [vmem:[#allocation7 + $0x3] sm:$0x1]
    %v405 = vlaneseq
    %v406 = vshrl.u32 %v405, 7
    %v407 = vsub.s32 0, %v406
    %v408 = vrot.slane %v404, %v407
    %v425 = vunpack.c.l.b16 %v388
    %v426 = vunpack.c.l.b16 %v389
    %v427 = vunpack.c.l.b16 %v390
    %v428 = vunpack.c.l.b16 %v391
    %v429 = vunpack.c.l.b16 %v392
    %v430 = vunpack.c.l.b16 %v393
    %v431 = vunpack.c.l.b16 %v394
    %v432 = vunpack.c.l.b16 %v395
    %v433 = vunpack.c.l.b16 %v396
    %v434 = vunpack.c.l.b16 %v397
    %v435 = vunpack.c.l.b16 %v398
    %v436 = vunpack.c.l.b16 %v399
    %v437 = vunpack.c.l.b16 %v400
    %v438 = vunpack.c.l.b16 %v401
    %v439 = vunpack.c.l.b16 %v402
    %v440 = vunpack.c.l.b16 %v403
    %v441 = vpack.c.b16 %v426, %v425
    %v442 = vpack.c.b16 %v428, %v427
    %v443 = vpack.c.b16 %v430, %v429
    %v444 = vpack.c.b16 %v432, %v431
    %v445 = vpack.c.b16 %v434, %v433
    %v446 = vpack.c.b16 %v436, %v435
    %v447 = vpack.c.b16 %v438, %v437
    %v448 = vpack.c.b16 %v440, %v439
    %457 = vmatprep.subr.bf16.mxu0 0
    %458 = vmatpush1.bf16.msra.mxu0 %v448
    %459 = vmatprep.subr.bf16.mxu0 0
    %460 = vmatpush1.bf16.msra.mxu0 %v447
    %461 = vmatprep.subr.bf16.mxu0 0
    %462 = vmatpush1.bf16.msra.mxu0 %v446
    %463 = vmatprep.subr.bf16.mxu0 0
    %464 = vmatpush1.bf16.msra.mxu0 %v445
    %465 = vmatprep.subr.bf16.mxu0 0
    %466 = vmatpush1.bf16.msra.mxu0 %v444
    %467 = vmatprep.subr.bf16.mxu0 0
    %468 = vmatpush1.bf16.msra.mxu0 %v443
    %469 = vmatprep.subr.bf16.mxu0 0
    %470 = vmatpush1.bf16.msra.mxu0 %v442
    %471 = vmatprep.subr.bf16.mxu0 0
    %472 = vmatpush1.bf16.msra.mxu0 %v441
    %473 = vmatprep.subr.bf16.mxu0 0
    %474 = vmatpush2.bf16.msra.mxu0 0
    %475 = vmatprep.subr.bf16.mxu0 0
    %476 = vmatpush2.bf16.msra.mxu0 0
    %477 = vmatprep.subr.bf16.mxu0 0
    %478 = vmatpush2.bf16.msra.mxu0 0
    %479 = vmatprep.subr.bf16.mxu0 0
    %480 = vmatpush2.bf16.msra.mxu0 0
    %481 = vmatprep.subr.bf16.mxu0 0
    %482 = vmatpush2.bf16.msra.mxu0 0
    %483 = vmatprep.subr.bf16.mxu0 0
    %484 = vmatpush2.bf16.msra.mxu0 0
    %485 = vmatprep.subr.bf16.mxu0 0
    %486 = vmatpush2.bf16.msra.mxu0 0
    %487 = vmatprep.subr.bf16.mxu0 0
    %488 = vmatpush2.bf16.msra.mxu0 0
    %489 = vmatprep.mubr.bf16.mxu0 0
    %490 = vmatmul.mubr.bf16.gmra.mxu0 %v387
    %v491 = vpop.f32.mrf.mxu0
    %v492 = vadd.f32 %v408, %v491
    %v493 = vpop.f32.mrf.mxu0
    %v494 = vpop.f32.mrf.mxu0
    %v495 = vpop.f32.mrf.mxu0
    %496 = vdwg.mxu0
    %v497 = vmax.f32 %v492, 0.0
    %v498 = vpack.c.bf16 %v497, %v497
    %v499 = vld [vmem:[#allocation5 + $0x100] sm:$0xf]
    %v500 = vld [vmem:[#allocation5 + $0x104] sm:$0xf]
    %v501 = vld [vmem:[#allocation5 + $0x108] sm:$0xf]
    %v502 = vld [vmem:[#allocation5 + $0x10c] sm:$0xf]
    %v503 = vld [vmem:[#allocation5 + $0x110] sm:$0xf]
    %v504 = vld [vmem:[#allocation5 + $0x114] sm:$0xf]
    %v505 = vld [vmem:[#allocation5 + $0x118] sm:$0xf]
    %v506 = vld [vmem:[#allocation5 + $0x11c] sm:$0xf]
    %v507 = vld [vmem:[#allocation5 + $0x120] sm:$0xf]
    %v508 = vld [vmem:[#allocation5 + $0x124] sm:$0xf]
    %v509 = vld [vmem:[#allocation5 + $0x128] sm:$0xf]
    %v510 = vld [vmem:[#allocation5 + $0x12c] sm:$0xf]
    %v511 = vld [vmem:[#allocation5 + $0x130] sm:$0xf]
    %v512 = vld [vmem:[#allocation5 + $0x134] sm:$0xf]
    %v513 = vld [vmem:[#allocation5 + $0x138] sm:$0xf]
    %v514 = vld [vmem:[#allocation5 + $0x13c] sm:$0xf]
    %v515 = vld [vmem:[#allocation7 + $0x4] sm:$0x1]
    %v516 = vlaneseq
    %v517 = vshrl.u32 %v516, 7
    %v518 = vsub.s32 0, %v517
    %v519 = vrot.slane %v515, %v518
    %v536 = vunpack.c.l.b16 %v499
    %v537 = vunpack.c.l.b16 %v500
    %v538 = vunpack.c.l.b16 %v501
    %v539 = vunpack.c.l.b16 %v502
    %v540 = vunpack.c.l.b16 %v503
    %v541 = vunpack.c.l.b16 %v504
    %v542 = vunpack.c.l.b16 %v505
    %v543 = vunpack.c.l.b16 %v506
    %v544 = vunpack.c.l.b16 %v507
    %v545 = vunpack.c.l.b16 %v508
    %v546 = vunpack.c.l.b16 %v509
    %v547 = vunpack.c.l.b16 %v510
    %v548 = vunpack.c.l.b16 %v511
    %v549 = vunpack.c.l.b16 %v512
    %v550 = vunpack.c.l.b16 %v513
    %v551 = vunpack.c.l.b16 %v514
    %v552 = vpack.c.b16 %v537, %v536
    %v553 = vpack.c.b16 %v539, %v538
    %v554 = vpack.c.b16 %v541, %v540
    %v555 = vpack.c.b16 %v543, %v542
    %v556 = vpack.c.b16 %v545, %v544
    %v557 = vpack.c.b16 %v547, %v546
    %v558 = vpack.c.b16 %v549, %v548
    %v559 = vpack.c.b16 %v551, %v550
    %568 = vmatprep.subr.bf16.mxu0 0
    %569 = vmatpush1.bf16.msra.mxu0 %v559
    %570 = vmatprep.subr.bf16.mxu0 0
    %571 = vmatpush1.bf16.msra.mxu0 %v558
    %572 = vmatprep.subr.bf16.mxu0 0
    %573 = vmatpush1.bf16.msra.mxu0 %v557
    %574 = vmatprep.subr.bf16.mxu0 0
    %575 = vmatpush1.bf16.msra.mxu0 %v556
    %576 = vmatprep.subr.bf16.mxu0 0
    %577 = vmatpush1.bf16.msra.mxu0 %v555
    %578 = vmatprep.subr.bf16.mxu0 0
    %579 = vmatpush1.bf16.msra.mxu0 %v554
    %580 = vmatprep.subr.bf16.mxu0 0
    %581 = vmatpush1.bf16.msra.mxu0 %v553
    %582 = vmatprep.subr.bf16.mxu0 0
    %583 = vmatpush1.bf16.msra.mxu0 %v552
    %584 = vmatprep.subr.bf16.mxu0 0
    %585 = vmatpush2.bf16.msra.mxu0 0
    %586 = vmatprep.subr.bf16.mxu0 0
    %587 = vmatpush2.bf16.msra.mxu0 0
    %588 = vmatprep.subr.bf16.mxu0 0
    %589 = vmatpush2.bf16.msra.mxu0 0
    %590 = vmatprep.subr.bf16.mxu0 0
    %591 = vmatpush2.bf16.msra.mxu0 0
    %592 = vmatprep.subr.bf16.mxu0 0
    %593 = vmatpush2.bf16.msra.mxu0 0
    %594 = vmatprep.subr.bf16.mxu0 0
    %595 = vmatpush2.bf16.msra.mxu0 0
    %596 = vmatprep.subr.bf16.mxu0 0
    %597 = vmatpush2.bf16.msra.mxu0 0
    %598 = vmatprep.subr.bf16.mxu0 0
    %599 = vmatpush2.bf16.msra.mxu0 0
    %600 = vmatprep.mubr.bf16.mxu0 0
    %601 = vmatmul.mubr.bf16.gmra.mxu0 %v498
    %v602 = vpop.f32.mrf.mxu0
    %v603 = vadd.f32 %v519, %v602
    %v604 = vpop.f32.mrf.mxu0
    %v605 = vpop.f32.mrf.mxu0
    %v606 = vpop.f32.mrf.mxu0
    %607 = vdwg.mxu0
    %v608 = vlaneseq
    %v609 = vand.u32 %v608, 127
    %vm610 = vcmp.lt.s32.totalorder %v609, 64
    %v611 = vsel %vm610, %v603, -1e+30
    %612 = vmax.xlane.f32.xlu0 %v611
    %v613 = vpop.xlane.xlu0 %612
    %v614 = vsub.f32 %v611, %v613
    %v615 = vmul.f32 %v614, 1.442695
    %v616 = vpow.pop %v615
    %617 = vadd.xlane.f32.xlu0 %v616
    %v618 = vpop.xlane.xlu0 %617
    %v619 = vrcp.pop %v618
    %v620 = vmul.f32 %v616, %v619
    %621 = vst [vmem:[#allocation8] sm:$0xff] %v620
    // Predicated region
    $region26: #{tpu_custom_call.1} parent=1 // pred_check
      _
    $region27: #{tpu_custom_call.1} parent=1 // pred_check_branch
      %623 = sbr.rel (0) target = $region29
    $region28: #{tpu_custom_call.1} parent=1 // pred_region
      %s625 = ssub.s32 128, 128
      %626 = vsyncadd [#allocation4], %s625
      %s628 = sshll.u32 [#allocation8], 4
      %s629 = int_to_ptr.vmem [resolvable:$true] %s628
      %631 = dma.vmem_to_hbm [thread:$0]  %s629, 128, %s3, [#allocation4]
    $region29: #{tpu_custom_call.1} parent=1 // pred_fallthru
      _
    // Predicated region
    $region30: #{tpu_custom_call.1} parent=1 // pred_check
      _
    $region31: #{tpu_custom_call.1} parent=1 // pred_check_branch
      %633 = sbr.rel (0) target = $region33
    $region32: #{tpu_custom_call.1} parent=1 // pred_region
      %634 = dma.done [#allocation4], 128
    $region33: #{tpu_custom_call.1} parent=1 // pred_fallthru
      _
    %635 = vsyncpa [#allocation3], 1
    %636 = vsyncpa [#allocation6], 1
    %637 = vsyncpa [#allocation4], 1

</llo_original>
